<compile_context>
chip_gen: v5e
topology: v5e:2x2
jax: 0.10.0
libtpu: 0.0.40
codegen_flags: <defaults>
</compile_context>

<pallas_src>
import jax
import jax.numpy as jnp
from jax.experimental import pallas as pl
from jax.experimental.pallas import tpu as pltpu


def rbf_kernel(x_ref, ct_ref, csq_ref, o_ref):
    # x_ref:   (TB, K)  batch tile of inputs
    # ct_ref:  (K, TO)  tile of transposed centers
    # csq_ref: (1, TO)  tile of precomputed ||c||^2
    # o_ref:   (TB, TO) output tile (lane-dense)
    x = x_ref[...].astype(jnp.float32)                        # (TB, K)
    ct = ct_ref[...].astype(jnp.float32)                      # (K, TO)
    # ||x||^2 per row: cheap O(TB*K) work.
    x_sq = jnp.sum(x * x, axis=-1, keepdims=True)             # (TB, 1)
    # -2 * x @ c^T: the O(TB*TO*K) term, on the MXU with f32 accumulation.
    xc = jnp.dot(x, ct, preferred_element_type=jnp.float32)   # (TB, TO)
    o_ref[...] = (x_sq + csq_ref[...] - 2.0 * xc).astype(o_ref.dtype)


def rbf_layer(x, centers, *, tile_b=None, tile_o=None):
    """Squared Euclidean distance of each row of x to each center (RBF layer)."""
    B, K = x.shape
    O, K2 = centers.shape
    assert K == K2, "feature dims must match"

    # ---- default batch tile: multiple of 8, divides B, <=256, and prefer
    # >=2 grid steps along the batch axis (keeps both v7x TensorCores busy).
    if tile_b is None:
        tile_b = B
        for cand in (256, 128, 64, 32, 16, 8):
            if B % cand == 0 and B // cand >= 2:
                tile_b = cand
                break
    assert B % tile_b == 0
    assert tile_b == B or tile_b % 8 == 0, "tile_b must be B or a multiple of 8"

    # ---- pad out_features to a lane-dense multiple of 128.
    O_pad = pl.cdiv(O, 128) * 128

    centers_f32 = centers.astype(jnp.float32)
    c_t = centers_f32.T                                        # (K, O)
    c_sq = jnp.sum(centers_f32 * centers_f32, axis=-1)         # (O,)
    if O_pad != O:
        c_t = jnp.pad(c_t, ((0, 0), (0, O_pad - O)))
        c_sq = jnp.pad(c_sq, (0, O_pad - O))
    c_sq = c_sq.reshape(1, O_pad)

    if tile_o is None:
        tile_o = 256 if O_pad % 256 == 0 else 128
    assert O_pad % tile_o == 0 and tile_o % 128 == 0

    grid = (B // tile_b, O_pad // tile_o)

    out_padded = pl.pallas_call(
        rbf_kernel,
        out_shape=jax.ShapeDtypeStruct((B, O_pad), x.dtype),
        grid=grid,
        in_specs=[
            # batch-tiled input block (full K, no K tiling needed at these sizes)
            pl.BlockSpec((tile_b, K), lambda i, j: (i, 0)),
            # O-tiled transposed centers
            pl.BlockSpec((K, tile_o), lambda i, j: (0, j)),
            # O-tiled precomputed ||c||^2 row
            pl.BlockSpec((1, tile_o), lambda i, j: (0, j)),
        ],
        out_specs=pl.BlockSpec((tile_b, tile_o), lambda i, j: (i, j)),
        compiler_params=pltpu.CompilerParams(
            dimension_semantics=("parallel", "parallel"),
        ),
    )(x, c_t, c_sq)

    return out_padded[:, :O] if O_pad != O else out_padded


if __name__ == "__main__":
    # LeNet-5 style sizes: in_features=84, out_features=10, small batch.
    B, in_features, out_features = 8, 84, 10

    key = jax.random.PRNGKey(0)
    kx, kc = jax.random.split(key)
    x = jax.random.normal(kx, (B, in_features), dtype=jnp.float32)
    # nn.Parameter(torch.zeros(...)) in the module; use deterministic random
    # values so the test is non-trivial (zeros would reduce to ||x||^2).
    centers = jax.random.normal(kc, (out_features, in_features), dtype=jnp.float32)

    out = jax.block_until_ready(rbf_layer(x, centers))

    # Pure-JAX reference (same math as the PyTorch forward).
    ref = jnp.sum((x[:, None, :] - centers[None, :, :]) ** 2, axis=-1)
    assert out.shape == (B, out_features)
    # The MXU decomposition reorders the rounding vs the direct broadcast
    # subtraction; tolerance accounts for that (values here are O(100)).
    assert jnp.allclose(out, ref, rtol=5e-3, atol=1e-2)

    print("KERNEL_OK")
</pallas_src>

<mosaic_0001>
module attributes {stable_mosaic.version = 11 : i64} {
  func.func @rbf_kernel(%arg0: i32, %arg1: i32, %arg2: memref<8x84xf32, #tpu.memory_space<vmem>>, %arg3: memref<84x128xf32, #tpu.memory_space<vmem>>, %arg4: memref<1x128xf32, #tpu.memory_space<vmem>>, %arg5: memref<8x128xf32, #tpu.memory_space<vmem>>) attributes {dimension_semantics = [#tpu.dimension_semantics<parallel>, #tpu.dimension_semantics<parallel>], iteration_bounds = array<i64: 1, 1>, scalar_prefetch = 0 : i64, scratch_operands = 0 : i64, tpu.core_type = #tpu.core_type<tc>, window_params = [{transform_indices = @transform_0, window_bounds = array<i64: 8, 84>}, {transform_indices = @transform_1, window_bounds = array<i64: 84, 128>}, {transform_indices = @transform_2, window_bounds = array<i64: 1, 128>}, {transform_indices = @transform_3, window_bounds = array<i64: 8, 128>}]} {
    %c0 = arith.constant 0 : index
    %c0_0 = arith.constant 0 : index
    %0 = vector.load %arg2[%c0, %c0_0] : memref<8x84xf32, #tpu.memory_space<vmem>>, vector<8x84xf32>
    %c0_1 = arith.constant 0 : index
    %c0_2 = arith.constant 0 : index
    %1 = vector.load %arg3[%c0_1, %c0_2] : memref<84x128xf32, #tpu.memory_space<vmem>>, vector<84x128xf32>
    %2 = arith.mulf %0, %0 : vector<8x84xf32>
    %cst = arith.constant dense<0.000000e+00> : vector<8xf32>
    %3 = vector.multi_reduction <add>, %2, %cst [1] : vector<8x84xf32> to vector<8xf32>
    %4 = vector.shape_cast %3 : vector<8xf32> to vector<8x1xf32>
    %cst_3 = arith.constant dense<0.000000e+00> : vector<8x128xf32>
    %5 = tpu.matmul %0, %1, %cst_3 {dimension_numbers = #tpu.dot_dimension_numbers<[1], [0], [0], [1], [0, 0, 1, 1], [], []>} : vector<8x84xf32>, vector<84x128xf32>, vector<8x128xf32> -> vector<8x128xf32>
    %c0_4 = arith.constant 0 : index
    %c0_5 = arith.constant 0 : index
    %6 = vector.load %arg4[%c0_4, %c0_5] : memref<1x128xf32, #tpu.memory_space<vmem>>, vector<1x128xf32>
    %7 = vector.broadcast %4 : vector<8x1xf32> to vector<8x128xf32>
    %8 = vector.broadcast %6 : vector<1x128xf32> to vector<8x128xf32>
    %9 = arith.addf %7, %8 : vector<8x128xf32>
    %cst_6 = arith.constant 2.000000e+00 : f32
    %10 = vector.broadcast %cst_6 : f32 to vector<8x128xf32>
    %11 = arith.mulf %10, %5 : vector<8x128xf32>
    %12 = arith.subf %9, %11 : vector<8x128xf32>
    %c0_7 = arith.constant 0 : index
    %c0_8 = arith.constant 0 : index
    %13 = vector.load %arg5[%c0_7, %c0_8] : memref<8x128xf32, #tpu.memory_space<vmem>>, vector<8x128xf32>
    tpu.vector_store %arg5[%c0_7, %c0_8], %12 {strides = array<i32>} : memref<8x128xf32, #tpu.memory_space<vmem>>, vector<8x128xf32>,
    return
  }
  func.func @transform_0(%arg0: i32, %arg1: i32) -> (i32, i32) {
    %c0_i32 = arith.constant 0 : i32
    %c0_i32_0 = arith.constant 0 : i32
    return %arg0, %c0_i32 : i32, i32
  }
  func.func @transform_1(%arg0: i32, %arg1: i32) -> (i32, i32) {
    %c0_i32 = arith.constant 0 : i32
    %c0_i32_0 = arith.constant 0 : i32
    return %c0_i32, %arg1 : i32, i32
  }
  func.func @transform_2(%arg0: i32, %arg1: i32) -> (i32, i32) {
    %c0_i32 = arith.constant 0 : i32
    %c0_i32_0 = arith.constant 0 : i32
    return %c0_i32, %arg1 : i32, i32
  }
  func.func @transform_3(%arg0: i32, %arg1: i32) -> (i32, i32) {
    %c0_i32 = arith.constant 0 : i32
    return %arg0, %arg1 : i32, i32
  }
}

</mosaic_0001>

<llo_original>
// kernel: tpu_custom_call.1
$region0: #{tpu_custom_call.1}
  #allocation0 [shape = 'u32[]', space=smem, size = 0x4, offset = 0x4, fixed_abs, tag = 'smem constant byte address 0x4 - core index']
  #allocation1 [shape = 'u32[72,128]{1,0:T(1,128)}', space=vmem, size = 0x9000, scoped, tag = 'internal scratch']
  %s0 = inlined_call_operand.hbm [shape: f32[8,84], index: 0, kind: input, shape index: {}]
  %s1 = inlined_call_operand.hbm [shape: f32[84,128], index: 1, kind: input, shape index: {}]
  %s2 = inlined_call_operand.vmem [shape: f32[1,128], index: 2, kind: input, shape index: {}]
  %s3 = inlined_call_operand.hbm [shape: f32[8,128], index: 3, kind: output, shape index: {}]
  %s4 = sld [smem:[#allocation0]]
  $region30: #{tpu_custom_call.1} parent=0
    _
  %s6 = ssub.s32 1, %s4
  %s7 = scalar_select 0, %s6, %s4
  $region1: #{tpu_custom_call.1} parent=0
    #allocation2 [shape = 'u8[4096]{0}', space=vmem, size = 0x1000, scoped, tag = 'input window, operand 0, single buffered']
    #allocation3 [shape = 's32[1]{0}', space=sflag, size = 0x4, scoped, tag = 'scoped memory for tpu_custom_call.1']
    #allocation4 [shape = 's32[1]{0}', space=sflag, size = 0x4, scoped, tag = 'scoped memory for tpu_custom_call.1']
    #allocation5 [shape = 'u8[45056]{0}', space=vmem, size = 0xb000, scoped, tag = 'input window, operand 1, single buffered']
    #allocation6 [shape = 's32[1]{0}', space=sflag, size = 0x4, scoped, tag = 'scoped memory for tpu_custom_call.1']
    #allocation7 [shape = 'u8[4096]{0}', space=vmem, size = 0x1000, scoped, tag = 'output window, operand 0, single buffered']
    %8 = vsyncpa [#allocation3], 0
    %9 = vsyncpa [#allocation6], 0
    %10 = vsyncpa [#allocation4], 0
    // Predicated region
    $region2: #{tpu_custom_call.1} parent=1 // pred_check
      _
    $region3: #{tpu_custom_call.1} parent=1 // pred_check_branch
      %12 = sbr.rel (0) target = $region5
    $region4: #{tpu_custom_call.1} parent=1 // pred_region
      %14 = vsyncadd [#allocation3], 0
      %s16 = sshll.u32 %s0, 4
      %s17 = int_to_ptr.hbm [resolvable:$true] %s16
      %s18 = sshll.u32 [#allocation2], 4
      %s19 = int_to_ptr.vmem [resolvable:$true] %s18
      %21 = dma.hbm_to_vmem [thread:$0]  %s17, 128, %s19, [#allocation3]
    $region5: #{tpu_custom_call.1} parent=1 // pred_fallthru
      _
    // Predicated region
    $region6: #{tpu_custom_call.1} parent=1 // pred_check
      _
    $region7: #{tpu_custom_call.1} parent=1 // pred_check_branch
      %23 = sbr.rel (0) target = $region9
    $region8: #{tpu_custom_call.1} parent=1 // pred_region
      %25 = vsyncadd [#allocation6], 0
      %s26 = sshll.u32 %s1, 4
      %s27 = int_to_ptr.hbm [resolvable:$true] %s26
      %s28 = sshll.u32 [#allocation5], 4
      %s29 = int_to_ptr.vmem [resolvable:$true] %s28
      %34 = dma.hbm_to_vmem [thread:$0]  %s27, 1408, %s29, [#allocation6], 128, 128, 8
    $region9: #{tpu_custom_call.1} parent=1 // pred_fallthru
      _
    // Predicated region
    $region10: #{tpu_custom_call.1} parent=1 // pred_check
      _
    $region11: #{tpu_custom_call.1} parent=1 // pred_check_branch
      %36 = sbr.rel (0) target = $region13
    $region12: #{tpu_custom_call.1} parent=1 // pred_region
      _
    $region13: #{tpu_custom_call.1} parent=1 // pred_fallthru
      _
    // Predicated region
    $region14: #{tpu_custom_call.1} parent=1 // pred_check
      _
    $region15: #{tpu_custom_call.1} parent=1 // pred_check_branch
      %38 = sbr.rel (0) target = $region17
    $region16: #{tpu_custom_call.1} parent=1 // pred_region
      %40 = dma.done [#allocation3], 128
    $region17: #{tpu_custom_call.1} parent=1 // pred_fallthru
      _
    // Predicated region
    $region18: #{tpu_custom_call.1} parent=1 // pred_check
      _
    $region19: #{tpu_custom_call.1} parent=1 // pred_check_branch
      %42 = sbr.rel (0) target = $region21
    $region20: #{tpu_custom_call.1} parent=1 // pred_region
      %44 = dma.done [#allocation6], 1408
    $region21: #{tpu_custom_call.1} parent=1 // pred_fallthru
      _
    %v45 = vld [vmem:[#allocation2] sm:$0xff]
    %v46 = vld [vmem:[#allocation5] sm:$0xff]
    %v47 = vld [vmem:[#allocation5 + $0x8] sm:$0xff]
    %v48 = vld [vmem:[#allocation5 + $0x10] sm:$0xff]
    %v49 = vld [vmem:[#allocation5 + $0x18] sm:$0xff]
    %v50 = vld [vmem:[#allocation5 + $0x20] sm:$0xff]
    %v51 = vld [vmem:[#allocation5 + $0x28] sm:$0xff]
    %v52 = vld [vmem:[#allocation5 + $0x30] sm:$0xff]
    %v53 = vld [vmem:[#allocation5 + $0x38] sm:$0xff]
    %v54 = vld [vmem:[#allocation5 + $0x40] sm:$0xff]
    %v55 = vld [vmem:[#allocation5 + $0x48] sm:$0xff]
    %v56 = vld [vmem:[#allocation5 + $0x50] sm:$0xf]
    %v57 = vmul.f32 %v45, %v45
    %vm58 = vcmask 687104
    %v59 = vsel %vm58, %v57, 0.0
    %60 = vadd.xlane.f32.xlu0 %v59
    %v61 = vpop.xlane.xlu0 %60
    %v63 = vsel %vm58, %v45, 0
    %vm65 = vcmask 1043456
    %v67 = vsel %vm65, %v56, 0
    %69 = vmatpush.msra.mxu0 0.0
    %70 = vmatpush.msra.mxu0 0.0
    %71 = vmatpush.msra.mxu0 0.0
    %72 = vmatpush.msra.mxu0 0.0
    %73 = vmatpush.msra.mxu0 0.0
    %74 = vmatpush.msra.mxu0 %v67
    %75 = vmatpush.msra.mxu0 %v55
    %76 = vmatpush.msra.mxu0 %v54
    %77 = vmatpush.msra.mxu0 %v53
    %78 = vmatpush.msra.mxu0 %v52
    %79 = vmatpush.msra.mxu0 %v51
    %80 = vmatpush.msra.mxu0 %v50
    %81 = vmatpush.msra.mxu0 %v49
    %82 = vmatpush.msra.mxu0 %v48
    %83 = vmatpush.msra.mxu0 %v47
    %84 = vmatpush.msra.mxu0 %v46
    %85 = vmatmul.f32.gmra.mxu0 %v63
    %v86 = vpop.f32.mrf.mxu0
    %v87 = vadd.f32 0.0, %v86
    %88 = vdwg.mxu0
    %v89 = vld [vmem:[%s2] sm:$0x1]
    %v91 = vperm.slane %v89, 0
    %v93 = vadd.f32 %v61, %v91
    %v94 = vmul.f32 %v87, 2.0
    %v95 = vsub.f32 %v93, %v94
    %96 = vst [vmem:[#allocation7] sm:$0xff] %v95
    // Predicated region
    $region22: #{tpu_custom_call.1} parent=1 // pred_check
      _
    $region23: #{tpu_custom_call.1} parent=1 // pred_check_branch
      %98 = sbr.rel (0) target = $region25
    $region24: #{tpu_custom_call.1} parent=1 // pred_region
      %100 = vsyncadd [#allocation4], 0
      %s102 = sshll.u32 [#allocation7], 4
      %s103 = int_to_ptr.vmem [resolvable:$true] %s102
      %s104 = sshll.u32 %s3, 4
      %s105 = int_to_ptr.hbm [resolvable:$true] %s104
      %107 = dma.vmem_to_hbm [thread:$0]  %s103, 128, %s105, [#allocation4]
    $region25: #{tpu_custom_call.1} parent=1 // pred_fallthru
      _
    // Predicated region
    $region26: #{tpu_custom_call.1} parent=1 // pred_check
      _
    $region27: #{tpu_custom_call.1} parent=1 // pred_check_branch
      %109 = sbr.rel (0) target = $region29
    $region28: #{tpu_custom_call.1} parent=1 // pred_region
      %111 = dma.done [#allocation4], 128
    $region29: #{tpu_custom_call.1} parent=1 // pred_fallthru
      _
    %112 = vsyncpa [#allocation3], 1
    %113 = vsyncpa [#allocation6], 1
    %114 = vsyncpa [#allocation4], 1

</llo_original>
